<compile_context>
chip_gen: v6e
topology: v6e:2x2x1
jax: 0.10.0
libtpu: 0.0.40
codegen_flags: <defaults>
</compile_context>

<pallas_src>
import functools

import jax
import jax.numpy as jnp
from jax.experimental import pallas as pl
from jax.experimental.pallas import tpu as pltpu

# ---- synthetic tokenizer / module constants -------------------------------
PAD_TOKEN_ID = 0          # nn.CrossEntropyLoss(ignore_index=pad_token_id)
IGNORE_INDEX = -100       # valid_mask = labels != -100
ENDING_IDS = (5, 6, 7)    # encode('.'), encode('!'), encode('?')
ALPHA = 0.1


def _coherence_ce_kernel(logits_ref, labels_ref,      # (TN, TV) float, (TN, 1) i32
                         out_ref,                      # (1, 128) f32 partials per row tile
                         m_ref, l_ref, lab_ref,        # (TN, 1) f32 online-softmax state
                         *, total_rows, total_vocab):
    i = pl.program_id(0)                  # row-tile index      ("parallel")
    j = pl.program_id(1)                  # vocab-chunk index   ("arbitrary" reduction)
    tn, tv = logits_ref.shape

    # -- reset per-row online-LSE state at the first vocab chunk -------------
    @pl.when(j == 0)
    def _():
        m_ref[...] = jnp.full_like(m_ref, -jnp.inf)
        l_ref[...] = jnp.zeros_like(l_ref)
        lab_ref[...] = jnp.zeros_like(lab_ref)

    labels = labels_ref[...]                               # (TN, 1) i32
    x = logits_ref[...].astype(jnp.float32)                # (TN, TV) f32 chunk

    col0 = j * tv                                          # scalar global column offset
    col_idx = jax.lax.broadcasted_iota(jnp.int32, (tn, tv), 1)   # local column ids
    # Mask columns past V (padded tail of the last vocab chunk).  Compare against
    # the scalar (V - col0) so no per-element offset add is needed.
    x_m = jnp.where(col_idx < (total_vocab - col0), x, -jnp.inf)

    # -- online (chunked) log-sum-exp -----------------------------------------
    m_prev = m_ref[...]
    m_new = jnp.maximum(m_prev, jnp.max(x_m, axis=-1, keepdims=True))
    alpha = jnp.exp(m_prev - m_new)                        # EUP
    e = jnp.exp(x_m - m_new)                               # EUP; masked columns -> 0
    l_ref[...] = alpha * l_ref[...] + jnp.sum(e, axis=-1, keepdims=True)
    m_ref[...] = m_new

    # -- fused label-logit gather (shifted-label compare; hits exactly once) --
    # In-range labels [0, V) never match a padded column, so no extra mask.
    match = col_idx == (labels - col0)
    lab_ref[...] += jnp.sum(jnp.where(match, x, 0.0), axis=-1, keepdims=True)

    # -- finalize this row tile on the last vocab chunk -----------------------
    @pl.when(j == pl.num_programs(1) - 1)
    def _():
        row_ids = i * tn + jax.lax.broadcasted_iota(jnp.int32, (tn, 1), 0)
        row_ok = row_ids < total_rows                      # mask padded tail rows
        nll = m_ref[...] + jnp.log(l_ref[...]) - lab_ref[...]        # (TN, 1)
        ce_valid = jnp.logical_and(labels != PAD_TOKEN_ID, row_ok)   # CE ignore_index mask
        not_ign = jnp.logical_and(labels != IGNORE_INDEX, row_ok)    # has_valid mask
        loss_sum = jnp.sum(jnp.where(ce_valid, nll, 0.0))
        valid_cnt = jnp.sum(ce_valid.astype(jnp.float32))
        not_ign_cnt = jnp.sum(not_ign.astype(jnp.float32))
        # Pack the three partial scalars into lanes 0..2 of a full (1,128) store.
        lane = jax.lax.broadcasted_iota(jnp.int32, (1, 128), 1)
        out_ref[...] = jnp.where(lane == 0, loss_sum,
                       jnp.where(lane == 1, valid_cnt,
                       jnp.where(lane == 2, not_ign_cnt, 0.0)))


def coherence_loss(logits, labels, input_ids, *, row_tile=None, vocab_chunk=None,
                   target_tile_bytes=1 << 20):
    """logits: (B, S, V) float (f32 or bf16), labels: (B, S) int, input_ids: (B, S) int."""
    b, s, v = logits.shape
    n = b * s

    # Keep logits' HBM dtype (bf16 halves HBM traffic); f32 math inside the kernel.
    logits2d = logits.reshape(n, v)
    labels2d = labels.reshape(n, 1).astype(jnp.int32)
    itemsize = jnp.dtype(logits2d.dtype).itemsize

    # ---- vocab chunk (lane axis): multiple of 128, or the full vocab --------
    if vocab_chunk is None:
        vocab_chunk = 2048
    if vocab_chunk >= v:
        tv = v                                           # full extent is always legal
    else:
        tv = max(128, (int(vocab_chunk) // 128) * 128)
        if tv >= v:
            tv = v

    # ---- row tile (sublane axis): size by bytes moved per grid step ---------
    if row_tile is None:
        row_tile = max(8, target_tile_bytes // (tv * itemsize))
        row_tile = min(row_tile, 1024)                   # bound f32 temporaries
    if row_tile >= n:
        tn = n                                           # full extent is always legal
    else:
        tn = max(8, (int(row_tile) // 8) * 8)            # sublane (8) alignment

    rt = pl.cdiv(n, tn)
    vt = pl.cdiv(v, tv)

    # VMEM limit: double-buffered input chunks + in-kernel f32 temporaries
    # (cast copy / exp / iota / masked copy) + scratch, with headroom.  Safe on
    # v7x's 64 MiB physical VMEM.
    vmem_bytes = (2 * tn * tv * itemsize       # double-buffered logits chunks
                  + 2 * tn * 4                 # double-buffered label tiles
                  + 4 * tn * tv * 4            # f32 temporaries inside the kernel
                  + 3 * tn * 4 + 2 * 128 * 4)  # online-LSE scratch + output block
    vmem_limit = int(vmem_bytes * 1.25) + (2 << 20)
    vmem_limit = max(16 << 20, min(vmem_limit, 48 << 20))

    kernel = functools.partial(_coherence_ce_kernel, total_rows=n, total_vocab=v)

    partials = pl.pallas_call(
        kernel,
        out_shape=jax.ShapeDtypeStruct((rt, 128), jnp.float32),
        grid_spec=pltpu.PrefetchScalarGridSpec(
            num_scalar_prefetch=0,
            grid=(rt, vt),                               # reduction (vocab) axis last
            in_specs=[
                pl.BlockSpec((tn, tv), lambda i, j: (i, j)),
                pl.BlockSpec((tn, 1), lambda i, j: (i, 0)),
            ],
            out_specs=pl.BlockSpec((1, 128), lambda i, j: (i, 0)),
            scratch_shapes=[pltpu.VMEM((tn, 1), jnp.float32)] * 3,
        ),
        compiler_params=pltpu.CompilerParams(
            dimension_semantics=("parallel", "arbitrary"),   # row tiles split across TCs (v7x)
            vmem_limit_bytes=vmem_limit,
        ),
        cost_estimate=pl.CostEstimate(
            flops=6 * n * v,
            transcendentals=n * v,
            bytes_accessed=n * v * itemsize + n * 4 + rt * 128 * 4,
        ),
    )(logits2d, labels2d)

    # ---- tiny host-side (XLA) finish: combine per-row-tile partials ---------
    totals = jnp.sum(partials[:, :3], axis=0)        # [loss_sum, valid_cnt, not_ignored_cnt]
    ce = totals[0] / totals[1]                       # mean over non-pad labels (NaN if all pad)

    # Ending-token ("coherence") term — O(B) scalar work, done in plain JAX.
    last = input_ids[:, -1]
    is_end = ((last == ENDING_IDS[0]) |
              (last == ENDING_IDS[1]) |
              (last == ENDING_IDS[2]))
    ending_loss = 1.0 - jnp.mean(is_end.astype(jnp.float32))
    coherence = jnp.where(totals[2] > 0.0, ending_loss, 0.0)   # if valid_mask.sum() > 0
    return ce + ALPHA * coherence


def coherence_loss_ref(logits, labels, input_ids):
    """Pure-JAX reference mirroring the PyTorch forward (regex term omitted)."""
    b, s, v = logits.shape
    x = logits.reshape(-1, v).astype(jnp.float32)
    y = labels.reshape(-1)
    logp = jax.nn.log_softmax(x, axis=-1)
    nll = -jnp.take_along_axis(logp, y[:, None], axis=-1)[:, 0]
    valid = y != PAD_TOKEN_ID
    ce = jnp.sum(jnp.where(valid, nll, 0.0)) / jnp.sum(valid.astype(jnp.float32))
    last = input_ids[:, -1]
    is_end = jnp.isin(last, jnp.asarray(ENDING_IDS))
    ending_loss = 1.0 - jnp.mean(is_end.astype(jnp.float32))
    has_valid = jnp.sum((labels != IGNORE_INDEX).astype(jnp.int32)) > 0
    coherence = jnp.where(has_valid, ending_loss, 0.0)
    return ce + ALPHA * coherence


if __name__ == "__main__":
    # Case 1: default auto-tiling (single tile at this toy size), f32 logits.
    B, S, V = 2, 8, 128
    k1, k2, k3 = jax.random.split(jax.random.PRNGKey(0), 3)
    logits = jax.random.normal(k1, (B, S, V), dtype=jnp.float32)
    labels = jax.random.randint(k2, (B, S), 0, V, dtype=jnp.int32)   # includes pad id 0
    input_ids = jax.random.randint(k3, (B, S), 0, V, dtype=jnp.int32)
    ref = coherence_loss_ref(logits, labels, input_ids)
    out = coherence_loss(logits, labels, input_ids)
    jax.block_until_ready(out)
    assert jnp.allclose(out, ref, atol=1e-5, rtol=1e-5), (out, ref)

    # Case 2: multiple row tiles AND vocab chunks with padded tails on both axes
    # (N=18 not a multiple of 8, V=200 not a multiple of 128) — exercises the
    # online-LSE accumulation plus the row/column masking.
    B2, S2, V2 = 2, 9, 200
    l2 = jax.random.normal(jax.random.PRNGKey(1), (B2, S2, V2), dtype=jnp.float32)
    y2 = jax.random.randint(jax.random.PRNGKey(2), (B2, S2), 0, V2, dtype=jnp.int32)
    ids2 = jax.random.randint(jax.random.PRNGKey(3), (B2, S2), 0, V2, dtype=jnp.int32)
    ref2 = coherence_loss_ref(l2, y2, ids2)
    out2 = coherence_loss(l2, y2, ids2, row_tile=8, vocab_chunk=128)
    jax.block_until_ready(out2)
    assert jnp.allclose(out2, ref2, atol=1e-5, rtol=1e-5), (out2, ref2)

    # Case 3: bf16 logits in HBM (half the HBM bytes); 3 vocab chunks; f32 math inside.
    B3, S3, V3 = 2, 8, 384
    l3 = jax.random.normal(jax.random.PRNGKey(4), (B3, S3, V3), dtype=jnp.float32)
    y3 = jax.random.randint(jax.random.PRNGKey(5), (B3, S3), 0, V3, dtype=jnp.int32)
    ids3 = jax.random.randint(jax.random.PRNGKey(6), (B3, S3), 0, V3, dtype=jnp.int32)
    l3b = l3.astype(jnp.bfloat16)
    ref3 = coherence_loss_ref(l3b, y3, ids3)
    out3 = coherence_loss(l3b, y3, ids3, row_tile=8, vocab_chunk=128)
    jax.block_until_ready(out3)
    assert jnp.allclose(out3, ref3, atol=1e-4, rtol=1e-4), (out3, ref3)

    print("KERNEL_OK")
</pallas_src>

<mosaic_0001>
module attributes {stable_mosaic.version = 11 : i64} {
  func.func @_coherence_ce_kernel(%arg0: i32, %arg1: i32, %arg2: memref<16x128xf32, #tpu.memory_space<vmem>>, %arg3: memref<16x1xi32, #tpu.memory_space<vmem>>, %arg4: memref<1x128xf32, #tpu.memory_space<vmem>>, %arg5: memref<16x1xf32, #tpu.memory_space<vmem>>, %arg6: memref<16x1xf32, #tpu.memory_space<vmem>>, %arg7: memref<16x1xf32, #tpu.memory_space<vmem>>) attributes {dimension_semantics = [#tpu.dimension_semantics<parallel>, #tpu.dimension_semantics<arbitrary>], iteration_bounds = array<i64: 1, 1>, scalar_prefetch = 0 : i64, scratch_operands = 3 : i64, tpu.core_type = #tpu.core_type<tc>, window_params = [{transform_indices = @transform_0, window_bounds = array<i64: 16, 128>}, {transform_indices = @transform_1, window_bounds = array<i64: 16, 1>}, {transform_indices = @transform_2, window_bounds = array<i64: 1, 128>}]} {
    %c0_i32 = arith.constant 0 : i32
    %0 = arith.cmpi eq, %arg1, %c0_i32 : i32
    %1 = arith.extui %0 : i1 to i32
    %c0_i32_0 = arith.constant 0 : i32
    %2 = arith.cmpi ne, %1, %c0_i32_0 : i32
    scf.if %2 {
      %cst_23 = arith.constant 0xFF800000 : f32
      %42 = vector.broadcast %cst_23 : f32 to vector<16x1xf32>
      %c0_24 = arith.constant 0 : index
      %c0_25 = arith.constant 0 : index
      %43 = vector.load %arg5[%c0_24, %c0_25] : memref<16x1xf32, #tpu.memory_space<vmem>>, vector<16x1xf32>
      tpu.vector_store %arg5[%c0_24, %c0_25], %42 {strides = array<i32>} : memref<16x1xf32, #tpu.memory_space<vmem>>, vector<16x1xf32>,
      %cst_26 = arith.constant 0.000000e+00 : f32
      %44 = vector.broadcast %cst_26 : f32 to vector<16x1xf32>
      %c0_27 = arith.constant 0 : index
      %c0_28 = arith.constant 0 : index
      %45 = vector.load %arg6[%c0_27, %c0_28] : memref<16x1xf32, #tpu.memory_space<vmem>>, vector<16x1xf32>
      tpu.vector_store %arg6[%c0_27, %c0_28], %44 {strides = array<i32>} : memref<16x1xf32, #tpu.memory_space<vmem>>, vector<16x1xf32>,
      %cst_29 = arith.constant 0.000000e+00 : f32
      %46 = vector.broadcast %cst_29 : f32 to vector<16x1xf32>
      %c0_30 = arith.constant 0 : index
      %c0_31 = arith.constant 0 : index
      %47 = vector.load %arg7[%c0_30, %c0_31] : memref<16x1xf32, #tpu.memory_space<vmem>>, vector<16x1xf32>
      tpu.vector_store %arg7[%c0_30, %c0_31], %46 {strides = array<i32>} : memref<16x1xf32, #tpu.memory_space<vmem>>, vector<16x1xf32>,
    } else {
    }
    %c0 = arith.constant 0 : index
    %c0_1 = arith.constant 0 : index
    %3 = vector.load %arg3[%c0, %c0_1] : memref<16x1xi32, #tpu.memory_space<vmem>>, vector<16x1xi32>
    %c0_2 = arith.constant 0 : index
    %c0_3 = arith.constant 0 : index
    %4 = vector.load %arg2[%c0_2, %c0_3] : memref<16x128xf32, #tpu.memory_space<vmem>>, vector<16x128xf32>
    %c128_i32 = arith.constant 128 : i32
    %5 = arith.muli %arg1, %c128_i32 : i32
    %6 = tpu.iota {dimensions = array<i32: 1>} : vector<16x128xi32>
    %c128_i32_4 = arith.constant 128 : i32
    %7 = arith.subi %c128_i32_4, %5 : i32
    %8 = vector.broadcast %7 : i32 to vector<16x128xi32>
    %9 = arith.cmpi slt, %6, %8 : vector<16x128xi32>
    %cst = arith.constant 0xFF800000 : f32
    %10 = vector.broadcast %cst : f32 to vector<16x128xf32>
    %11 = arith.select %9, %4, %10 : vector<16x128xi1>, vector<16x128xf32>
    %c0_5 = arith.constant 0 : index
    %c0_6 = arith.constant 0 : index
    %12 = vector.load %arg5[%c0_5, %c0_6] : memref<16x1xf32, #tpu.memory_space<vmem>>, vector<16x1xf32>
    %cst_7 = arith.constant dense<0xFF800000> : vector<16xf32>
    %13 = vector.multi_reduction <maximumf>, %11, %cst_7 [1] : vector<16x128xf32> to vector<16xf32>
    %14 = vector.shape_cast %13 : vector<16xf32> to vector<16x1xf32>
    %15 = arith.maximumf %12, %14 : vector<16x1xf32>
    %16 = arith.subf %12, %15 : vector<16x1xf32>
    %17 = math.exp %16 : vector<16x1xf32>
    %18 = vector.broadcast %15 : vector<16x1xf32> to vector<16x128xf32>
    %19 = arith.subf %11, %18 : vector<16x128xf32>
    %20 = math.exp %19 : vector<16x128xf32>
    %c0_8 = arith.constant 0 : index
    %c0_9 = arith.constant 0 : index
    %21 = vector.load %arg6[%c0_8, %c0_9] : memref<16x1xf32, #tpu.memory_space<vmem>>, vector<16x1xf32>
    %22 = arith.mulf %17, %21 : vector<16x1xf32>
    %cst_10 = arith.constant dense<0.000000e+00> : vector<16xf32>
    %23 = vector.multi_reduction <add>, %20, %cst_10 [1] : vector<16x128xf32> to vector<16xf32>
    %24 = vector.shape_cast %23 : vector<16xf32> to vector<16x1xf32>
    %25 = arith.addf %22, %24 : vector<16x1xf32>
    %c0_11 = arith.constant 0 : index
    %c0_12 = arith.constant 0 : index
    %26 = vector.load %arg6[%c0_11, %c0_12] : memref<16x1xf32, #tpu.memory_space<vmem>>, vector<16x1xf32>
    tpu.vector_store %arg6[%c0_11, %c0_12], %25 {strides = array<i32>} : memref<16x1xf32, #tpu.memory_space<vmem>>, vector<16x1xf32>,
    %c0_13 = arith.constant 0 : index
    %c0_14 = arith.constant 0 : index
    %27 = vector.load %arg5[%c0_13, %c0_14] : memref<16x1xf32, #tpu.memory_space<vmem>>, vector<16x1xf32>
    tpu.vector_store %arg5[%c0_13, %c0_14], %15 {strides = array<i32>} : memref<16x1xf32, #tpu.memory_space<vmem>>, vector<16x1xf32>,
    %28 = vector.broadcast %5 : i32 to vector<16x1xi32>
    %29 = arith.subi %3, %28 : vector<16x1xi32>
    %30 = vector.broadcast %29 : vector<16x1xi32> to vector<16x128xi32>
    %31 = arith.cmpi eq, %6, %30 : vector<16x128xi32>
    %c0_15 = arith.constant 0 : index
    %c0_16 = arith.constant 0 : index
    %32 = vector.load %arg7[%c0_15, %c0_16] : memref<16x1xf32, #tpu.memory_space<vmem>>, vector<16x1xf32>
    %cst_17 = arith.constant 0.000000e+00 : f32
    %33 = vector.broadcast %cst_17 : f32 to vector<16x128xf32>
    %34 = arith.select %31, %4, %33 : vector<16x128xi1>, vector<16x128xf32>
    %cst_18 = arith.constant dense<0.000000e+00> : vector<16xf32>
    %35 = vector.multi_reduction <add>, %34, %cst_18 [1] : vector<16x128xf32> to vector<16xf32>
    %36 = vector.shape_cast %35 : vector<16xf32> to vector<16x1xf32>
    %37 = arith.addf %32, %36 : vector<16x1xf32>
    %c0_19 = arith.constant 0 : index
    %c0_20 = arith.constant 0 : index
    %38 = vector.load %arg7[%c0_19, %c0_20] : memref<16x1xf32, #tpu.memory_space<vmem>>, vector<16x1xf32>
    tpu.vector_store %arg7[%c0_19, %c0_20], %37 {strides = array<i32>} : memref<16x1xf32, #tpu.memory_space<vmem>>, vector<16x1xf32>,
    %c0_i32_21 = arith.constant 0 : i32
    %39 = arith.cmpi eq, %arg1, %c0_i32_21 : i32
    %40 = arith.extui %39 : i1 to i32
    %c0_i32_22 = arith.constant 0 : i32
    %41 = arith.cmpi ne, %40, %c0_i32_22 : i32
    scf.if %41 {
      %c16_i32 = arith.constant 16 : i32
      %42 = arith.muli %arg0, %c16_i32 : i32
      %43 = tpu.iota {dimensions = array<i32: 0>} : vector<16x1xi32>
      %44 = vector.broadcast %42 : i32 to vector<16x1xi32>
      %45 = arith.addi %44, %43 : vector<16x1xi32>
      %c16_i32_23 = arith.constant 16 : i32
      %46 = vector.broadcast %c16_i32_23 : i32 to vector<16x1xi32>
      %47 = arith.cmpi slt, %45, %46 : vector<16x1xi32>
      %c0_24 = arith.constant 0 : index
      %c0_25 = arith.constant 0 : index
      %48 = vector.load %arg5[%c0_24, %c0_25] : memref<16x1xf32, #tpu.memory_space<vmem>>, vector<16x1xf32>
      %c0_26 = arith.constant 0 : index
      %c0_27 = arith.constant 0 : index
      %49 = vector.load %arg6[%c0_26, %c0_27] : memref<16x1xf32, #tpu.memory_space<vmem>>, vector<16x1xf32>
      %50 = math.log %49 : vector<16x1xf32>
      %51 = arith.addf %48, %50 : vector<16x1xf32>
      %c0_28 = arith.constant 0 : index
      %c0_29 = arith.constant 0 : index
      %52 = vector.load %arg7[%c0_28, %c0_29] : memref<16x1xf32, #tpu.memory_space<vmem>>, vector<16x1xf32>
      %53 = arith.subf %51, %52 : vector<16x1xf32>
      %c0_i32_30 = arith.constant 0 : i32
      %54 = vector.broadcast %c0_i32_30 : i32 to vector<16x1xi32>
      %55 = arith.cmpi ne, %3, %54 : vector<16x1xi32>
      %56 = arith.andi %55, %47 : vector<16x1xi1>
      %c-100_i32 = arith.constant -100 : i32
      %57 = vector.broadcast %c-100_i32 : i32 to vector<16x1xi32>
      %58 = arith.cmpi ne, %3, %57 : vector<16x1xi32>
      %59 = arith.andi %58, %47 : vector<16x1xi1>
      %cst_31 = arith.constant 0.000000e+00 : f32
      %60 = vector.broadcast %cst_31 : f32 to vector<16x1xf32>
      %61 = arith.select %56, %53, %60 : vector<16x1xi1>, vector<16x1xf32>
      %62 = vector.shape_cast %61 : vector<16x1xf32> to vector<1x16x1xf32>
      %cst_32 = arith.constant dense<0.000000e+00> : vector<1xf32>
      %63 = vector.multi_reduction <add>, %62, %cst_32 [1, 2] : vector<1x16x1xf32> to vector<1xf32>
      %64 = vector.shape_cast %63 : vector<1xf32> to vector<1x1x1xf32>
      %65 = vector.extract %64[0, 0, 0] : f32 from vector<1x1x1xf32>
      %66 = arith.extui %56 : vector<16x1xi1> to vector<16x1xi32>
      %67 = arith.sitofp %66 : vector<16x1xi32> to vector<16x1xf32>
      %68 = vector.shape_cast %67 : vector<16x1xf32> to vector<1x16x1xf32>
      %cst_33 = arith.constant dense<0.000000e+00> : vector<1xf32>
      %69 = vector.multi_reduction <add>, %68, %cst_33 [1, 2] : vector<1x16x1xf32> to vector<1xf32>
      %70 = vector.shape_cast %69 : vector<1xf32> to vector<1x1x1xf32>
      %71 = vector.extract %70[0, 0, 0] : f32 from vector<1x1x1xf32>
      %72 = arith.extui %59 : vector<16x1xi1> to vector<16x1xi32>
      %73 = arith.sitofp %72 : vector<16x1xi32> to vector<16x1xf32>
      %74 = vector.shape_cast %73 : vector<16x1xf32> to vector<1x16x1xf32>
      %cst_34 = arith.constant dense<0.000000e+00> : vector<1xf32>
      %75 = vector.multi_reduction <add>, %74, %cst_34 [1, 2] : vector<1x16x1xf32> to vector<1xf32>
      %76 = vector.shape_cast %75 : vector<1xf32> to vector<1x1x1xf32>
      %77 = vector.extract %76[0, 0, 0] : f32 from vector<1x1x1xf32>
      %78 = tpu.iota {dimensions = array<i32: 1>} : vector<1x128xi32>
      %c0_i32_35 = arith.constant 0 : i32
      %79 = vector.broadcast %c0_i32_35 : i32 to vector<1x128xi32>
      %80 = arith.cmpi eq, %78, %79 : vector<1x128xi32>
      %c1_i32 = arith.constant 1 : i32
      %81 = vector.broadcast %c1_i32 : i32 to vector<1x128xi32>
      %82 = arith.cmpi eq, %78, %81 : vector<1x128xi32>
      %c2_i32 = arith.constant 2 : i32
      %83 = vector.broadcast %c2_i32 : i32 to vector<1x128xi32>
      %84 = arith.cmpi eq, %78, %83 : vector<1x128xi32>
      %cst_36 = arith.constant 0.000000e+00 : f32
      %85 = vector.broadcast %77 : f32 to vector<1x128xf32>
      %86 = vector.broadcast %cst_36 : f32 to vector<1x128xf32>
      %87 = arith.select %84, %85, %86 : vector<1x128xi1>, vector<1x128xf32>
      %88 = vector.broadcast %71 : f32 to vector<1x128xf32>
      %89 = arith.select %82, %88, %87 : vector<1x128xi1>, vector<1x128xf32>
      %90 = vector.broadcast %65 : f32 to vector<1x128xf32>
      %91 = arith.select %80, %90, %89 : vector<1x128xi1>, vector<1x128xf32>
      %c0_37 = arith.constant 0 : index
      %c0_38 = arith.constant 0 : index
      %92 = vector.load %arg4[%c0_37, %c0_38] : memref<1x128xf32, #tpu.memory_space<vmem>>, vector<1x128xf32>
      tpu.vector_store %arg4[%c0_37, %c0_38], %91 {strides = array<i32>} : memref<1x128xf32, #tpu.memory_space<vmem>>, vector<1x128xf32>,
    } else {
    }
    return
  }
  func.func @transform_0(%arg0: i32, %arg1: i32) -> (i32, i32) {
    %c0_i32 = arith.constant 0 : i32
    return %arg0, %arg1 : i32, i32
  }
  func.func @transform_1(%arg0: i32, %arg1: i32) -> (i32, i32) {
    %c0_i32 = arith.constant 0 : i32
    %c0_i32_0 = arith.constant 0 : i32
    return %arg0, %c0_i32 : i32, i32
  }
  func.func @transform_2(%arg0: i32, %arg1: i32) -> (i32, i32) {
    %c0_i32 = arith.constant 0 : i32
    %c0_i32_0 = arith.constant 0 : i32
    return %arg0, %c0_i32 : i32, i32
  }
}

</mosaic_0001>

<llo_original>
// kernel: tpu_custom_call.1
$region0: #{tpu_custom_call.1}
  #allocation0 [shape = 'u32[]', space=smem, size = 0x4, offset = 0x4, fixed_abs, tag = 'smem constant byte address 0x4 - core index']
  #allocation1 [shape = 'u32[144,128]{1,0:T(1,128)}', space=vmem, size = 0x12000, scoped, tag = 'internal scratch']
  #allocation2 [shape = 'f32[16,1]{1,0:T(8,128)}', space=vmem, size = 0x2000, scoped, tag = 'scratch operand']
  #allocation3 [shape = 'f32[16,1]{1,0:T(8,128)}', space=vmem, size = 0x2000, scoped, tag = 'scratch operand']
  #allocation4 [shape = 'f32[16,1]{1,0:T(8,128)}', space=vmem, size = 0x2000, scoped, tag = 'scratch operand']
  %s0 = inlined_call_operand.vmem [shape: f32[16,128], index: 0, kind: input, shape index: {}]
  %s1 = inlined_call_operand.vmem [shape: s32[16,1], index: 1, kind: input, shape index: {}]
  %s2 = inlined_call_operand.hbm [shape: f32[1,128], index: 2, kind: output, shape index: {}]
  %s3 = sld [smem:[#allocation0]]
  $region26: #{tpu_custom_call.1} parent=0
    _
  %s5 = ssub.s32 1, %s3
  %s6 = scalar_select 0, %s5, %s3
  $region1: #{tpu_custom_call.1} parent=0
    #allocation5 [shape = 'u8[512]{0}', space=vmem, size = 0x400, scoped, tag = 'output window, operand 0, single buffered']
    #allocation6 [shape = 's32[1]{0}', space=sflag, size = 0x4, scoped, tag = 'scoped memory for tpu_custom_call.1']
    %7 = vsyncpa [#allocation6], 0
    // Predicated region
    $region2: #{tpu_custom_call.1} parent=1 // pred_check
      _
    $region3: #{tpu_custom_call.1} parent=1 // pred_check_branch
      %9 = sbr.rel (0) target = $region5
    $region4: #{tpu_custom_call.1} parent=1 // pred_region
      _
    $region5: #{tpu_custom_call.1} parent=1 // pred_fallthru
      _
    // Predicated region
    $region6: #{tpu_custom_call.1} parent=1 // pred_check
      _
    $region7: #{tpu_custom_call.1} parent=1 // pred_check_branch
      %11 = sbr.rel (0) target = $region9
    $region8: #{tpu_custom_call.1} parent=1 // pred_region
      _
    $region9: #{tpu_custom_call.1} parent=1 // pred_fallthru
      _
    %p12 = scmp.eq.s32.totalorder 0, 0
    // Predicated region
    $region10: #{tpu_custom_call.1} parent=1 // pred_check
      %p13 = pneg %p12
    $region11: #{tpu_custom_call.1} parent=1 // pred_check_branch
      %15 = sbr.rel (%p13) target = $region13
    $region12: #{tpu_custom_call.1} parent=1 // pred_region
      %vm16 = vcmask 7168
      %17 = vst.msk [vmem:[#allocation2] sm:$0xff] %vm16, -inf
      %18 = vst.msk [vmem:[#allocation2 + $0x8] sm:$0xff] %vm16, -inf
      %19 = vst.msk [vmem:[#allocation3] sm:$0xff] %vm16, 0.0
      %20 = vst.msk [vmem:[#allocation3 + $0x8] sm:$0xff] %vm16, 0.0
      %21 = vst.msk [vmem:[#allocation4] sm:$0xff] %vm16, 0.0
      %22 = vst.msk [vmem:[#allocation4 + $0x8] sm:$0xff] %vm16, 0.0
    $region13: #{tpu_custom_call.1} parent=1 // pred_fallthru
      _
    %v23 = vld [vmem:[%s1] sm:$0xff]
    %v24 = vld [vmem:[%s1 + $0x8] sm:$0xff]
    %v25 = vld [vmem:[%s0] sm:$0xff]
    %v26 = vld [vmem:[%s0 + $0x8] sm:$0xff]
    %s27 = smul.u32 0, 128
    %v28 = vlaneseq
    %v29 = vand.u32 %v28, 127
    %s30 = ssub.s32 128, %s27
    %v31 = vstv %s30
    %vm32 = vcmp.lt.s32.totalorder %v29, %v31
    %v33 = vsel %vm32, %v25, -inf
    %v34 = vsel %vm32, %v26, -inf
    %v35 = vld [vmem:[#allocation2] sm:$0xff]
    %v36 = vld [vmem:[#allocation2 + $0x8] sm:$0xff]
    %37 = vmax.xlane.f32.xlu0 %v33
    %v38 = vpop.xlane.xlu0 %37
    %39 = vmax.xlane.f32.xlu0 %v34
    %v40 = vpop.xlane.xlu0 %39
    %v41 = vmax.f32 %v35, %v38
    %v42 = vmax.f32 %v36, %v40
    %v43 = vsub.f32 %v35, %v41
    %v44 = vsub.f32 %v36, %v42
    %v45 = vmul.f32 %v43, 1.442695
    %v46 = vpow.pop %v45
    %v47 = vmul.f32 %v44, 1.442695
    %v48 = vpow.pop %v47
    %50 = vset.pattern.permute.xlu0 0
    %51 = vperm.xlu0 %50, %v41
    %v52 = vpop.permute.xlu0 %51
    %55 = vset.pattern.permute.xlu0 0
    %56 = vperm.xlu0 %55, %v42
    %v57 = vpop.permute.xlu0 %56
    %v59 = vsub.f32 %v33, %v52
    %v60 = vsub.f32 %v34, %v57
    %v61 = vmul.f32 %v59, 1.442695
    %v62 = vpow.pop %v61
    %v63 = vmul.f32 %v60, 1.442695
    %v64 = vpow.pop %v63
    %v65 = vld [vmem:[#allocation3] sm:$0xff]
    %v66 = vld [vmem:[#allocation3 + $0x8] sm:$0xff]
    %v67 = vmul.f32 %v46, %v65
    %v68 = vmul.f32 %v48, %v66
    %69 = vadd.xlane.f32.xlu0 %v62
    %v70 = vpop.xlane.xlu0 %69
    %71 = vadd.xlane.f32.xlu0 %v64
    %v72 = vpop.xlane.xlu0 %71
    %v73 = vadd.f32 %v67, %v70
    %v74 = vadd.f32 %v68, %v72
    %vm75 = vcmask 7168
    %76 = vst.msk [vmem:[#allocation3] sm:$0xff] %vm75, %v73
    %77 = vst.msk [vmem:[#allocation3 + $0x8] sm:$0xff] %vm75, %v74
    %78 = vst.msk [vmem:[#allocation2] sm:$0xff] %vm75, %v41
    %79 = vst.msk [vmem:[#allocation2 + $0x8] sm:$0xff] %vm75, %v42
    %v80 = vstv %s27
    %v81 = vsub.s32 %v23, %v80
    %v82 = vsub.s32 %v24, %v80
    %83 = vset.pattern.permute.xlu0 0
    %84 = vperm.xlu0 %83, %v81
    %v85 = vpop.permute.xlu0 %84
    %86 = vset.pattern.permute.xlu0 0
    %87 = vperm.xlu0 %86, %v82
    %v88 = vpop.permute.xlu0 %87
    %vm89 = vcmp.eq.s32.totalorder %v29, %v85
    %vm90 = vcmp.eq.s32.totalorder %v29, %v88
    %v91 = vld [vmem:[#allocation4] sm:$0xff]
    %v92 = vld [vmem:[#allocation4 + $0x8] sm:$0xff]
    %v93 = vsel %vm89, %v25, 0.0
    %v94 = vsel %vm90, %v26, 0.0
    %95 = vadd.xlane.f32.xlu0 %v93
    %v96 = vpop.xlane.xlu0 %95
    %97 = vadd.xlane.f32.xlu0 %v94
    %v98 = vpop.xlane.xlu0 %97
    %v99 = vadd.f32 %v91, %v96
    %v100 = vadd.f32 %v92, %v98
    %101 = vst.msk [vmem:[#allocation4] sm:$0xff] %vm75, %v99
    %102 = vst.msk [vmem:[#allocation4 + $0x8] sm:$0xff] %vm75, %v100
    // Predicated region
    $region14: #{tpu_custom_call.1} parent=1 // pred_check
      %p103 = pneg %p12
    $region15: #{tpu_custom_call.1} parent=1 // pred_check_branch
      %105 = sbr.rel (%p103) target = $region17
    $region16: #{tpu_custom_call.1} parent=1 // pred_region
      %s106 = smul.u32 0, 16
      %v107 = vlaneseq
      %v108 = vshrl.u32 %v107, 7
      %v109 = vadd.s32 %v108, 8
      %v110 = vstv %s106
      %v111 = vadd.s32 %v110, %v108
      %v112 = vadd.s32 %v110, %v109
      %vm113 = vcmp.lt.s32.totalorder %v111, 16
      %vm114 = vcmp.lt.s32.totalorder %v112, 16
      %v115 = vld [vmem:[#allocation2] sm:$0xff]
      %v116 = vld [vmem:[#allocation2 + $0x8] sm:$0xff]
      %v117 = vld [vmem:[#allocation3] sm:$0xff]
      %v118 = vld [vmem:[#allocation3 + $0x8] sm:$0xff]
      %v119 = vlog2.pop %v117
      %v120 = vmul.f32 %v119, 0.6931472
      %v121 = vlog2.pop %v118
      %v122 = vmul.f32 %v121, 0.6931472
      %v123 = vadd.f32 %v115, %v120
      %v124 = vadd.f32 %v116, %v122
      %v125 = vld [vmem:[#allocation4] sm:$0xff]
      %v126 = vld [vmem:[#allocation4 + $0x8] sm:$0xff]
      %v127 = vsub.f32 %v123, %v125
      %v128 = vsub.f32 %v124, %v126
      %vm129 = vcmp.ne.s32.totalorder %v23, 0
      %vm130 = vcmp.ne.s32.totalorder %v24, 0
      %vm131 = vmand %vm129, %vm113
      %vm132 = vmand %vm130, %vm114
      %vm133 = vcmp.ne.s32.totalorder %v23, 4294967196
      %vm134 = vcmp.ne.s32.totalorder %v24, 4294967196
      %vm135 = vmand %vm133, %vm113
      %vm136 = vmand %vm134, %vm114
      %v137 = vsel %vm131, %v127, 0.0
      %v138 = vsel %vm132, %v128, 0.0
      %v139 = vsel %vm75, %v137, 0.0
      %v140 = vsel %vm75, %v138, 0.0
      %v141 = vadd.f32 %v139, %v140
      %142 = vadd.xlane.f32.xlu0 %v141
      %v143 = vpop.xlane.xlu0 %142
      %v144 = vrot.slane %v143, 4
      %v145 = vadd.f32 %v143, %v144
      %v146 = vrot.slane %v145, 2
      %v147 = vadd.f32 %v145, %v146
      %v148 = vrot.slane %v147, 1
      %v149 = vadd.f32 %v147, %v148
      %s150 = vtos %v149
      %v151 = vsel %vm131, 1, 0
      %v152 = vsel %vm132, 1, 0
      %v153 = vcvt.s32.f32 %v151
      %v154 = vcvt.s32.f32 %v152
      %v155 = vsel %vm75, %v153, 0.0
      %v156 = vsel %vm75, %v154, 0.0
      %v157 = vadd.f32 %v155, %v156
      %158 = vadd.xlane.f32.xlu0 %v157
      %v159 = vpop.xlane.xlu0 %158
      %v160 = vrot.slane %v159, 4
      %v161 = vadd.f32 %v159, %v160
      %v162 = vrot.slane %v161, 2
      %v163 = vadd.f32 %v161, %v162
      %v164 = vrot.slane %v163, 1
      %v165 = vadd.f32 %v163, %v164
      %s166 = vtos %v165
      %v167 = vsel %vm135, 1, 0
      %v168 = vsel %vm136, 1, 0
      %v169 = vcvt.s32.f32 %v167
      %v170 = vcvt.s32.f32 %v168
      %v171 = vsel %vm75, %v169, 0.0
      %v172 = vsel %vm75, %v170, 0.0
      %v173 = vadd.f32 %v171, %v172
      %174 = vadd.xlane.f32.xlu0 %v173
      %v175 = vpop.xlane.xlu0 %174
      %v176 = vrot.slane %v175, 4
      %v177 = vadd.f32 %v175, %v176
      %v178 = vrot.slane %v177, 2
      %v179 = vadd.f32 %v177, %v178
      %v180 = vrot.slane %v179, 1
      %v181 = vadd.f32 %v179, %v180
      %s182 = vtos %v181
      %vm183 = vcmp.eq.s32.totalorder %v29, 0
      %vm184 = vcmp.eq.s32.totalorder %v29, 1
      %vm185 = vcmp.eq.s32.totalorder %v29, 2
      %v186 = vstv %s182
      %v187 = vsel %vm185, %v186, 0.0
      %v188 = vstv %s166
      %v189 = vsel %vm184, %v188, %v187
      %v190 = vstv %s150
      %v191 = vsel %vm183, %v190, %v189
      %192 = vst [vmem:[#allocation5] sm:$0x1] %v191
    $region17: #{tpu_custom_call.1} parent=1 // pred_fallthru
      _
    // Predicated region
    $region18: #{tpu_custom_call.1} parent=1 // pred_check
      _
    $region19: #{tpu_custom_call.1} parent=1 // pred_check_branch
      %194 = sbr.rel (0) target = $region21
    $region20: #{tpu_custom_call.1} parent=1 // pred_region
      %s196 = ssub.s32 16, 16
      %197 = vsyncadd [#allocation6], %s196
      %s199 = sshll.u32 [#allocation5], 4
      %s200 = int_to_ptr.vmem [resolvable:$true] %s199
      %202 = dma.vmem_to_hbm [thread:$0]  %s200, 16, %s2, [#allocation6]
    $region21: #{tpu_custom_call.1} parent=1 // pred_fallthru
      _
    // Predicated region
    $region22: #{tpu_custom_call.1} parent=1 // pred_check
      _
    $region23: #{tpu_custom_call.1} parent=1 // pred_check_branch
      %204 = sbr.rel (0) target = $region25
    $region24: #{tpu_custom_call.1} parent=1 // pred_region
      %205 = dma.done [#allocation6], 16
    $region25: #{tpu_custom_call.1} parent=1 // pred_fallthru
      _
    %206 = vsyncpa [#allocation6], 1

</llo_original>
